<compile_context>
chip_gen: v5e
topology: v5e:2x2
jax: 0.10.0
libtpu: 0.0.40
codegen_flags: <defaults>
</compile_context>

<pallas_src>
import functools
import math

import jax
import jax.numpy as jnp
from jax.experimental import pallas as pl
from jax.experimental.pallas import tpu as pltpu


def _qkv_proj_kernel(x_ref, w_ref, b_ref, q_ref, k_ref, v_ref, *, head_dim):
    """Grid (B, row_tiles, H): fused per-head QKV projection (single matmul).

    x_ref : (tr, C)   bf16 activations
    w_ref : (C, 3D)   bf16 fused per-head [wq | wk | wv] (scale folded into wq)
    b_ref : (1, 3D)   f32  fused per-head bias          (scale folded into bq)
    q/k/v : (tr, D)   bf16 outputs, head-major (B, H, T, D) layout
    """
    D = head_dim
    x = x_ref[...]                                                   # (tr, C)
    qkv = jnp.dot(x, w_ref[...], preferred_element_type=jnp.float32) + b_ref[...]
    # Static lane slices of the (tr, 3D) result.  (If D < 128 a two-heads-per-
    # block packing would make the stores lane-dense; skipped for clarity.)
    q_ref[...] = qkv[:, 0 * D:1 * D].astype(q_ref.dtype)
    k_ref[...] = qkv[:, 1 * D:2 * D].astype(k_ref.dtype)
    v_ref[...] = qkv[:, 2 * D:3 * D].astype(v_ref.dtype)


def _attn_proj_kernel(q_ref, k_ref, v_ref, wp_ref, bp_ref, o_ref, *, tq, tk):
    """Grid (B, q_tiles, H): causal flash attention + fused output projection.

    q_ref : (tq, D)   bf16 query tile (pre-scaled by 1/sqrt(D))
    k_ref : (T, D)    bf16 full keys for this (batch, head)
    v_ref : (T, D)    bf16 full values for this (batch, head)
    wp_ref: (H, D, C) bf16 resident c_proj weights (fetched once, constant map)
    bp_ref: (1, C)    f32  resident c_proj bias
    o_ref : (tq, C)   f32  output block; revisited/accumulated across heads
    """
    i = pl.program_id(1)          # query-tile index
    h = pl.program_id(2)          # head index (innermost reduction axis)
    D = q_ref.shape[-1]

    q = q_ref[...]                # (tq, D) bf16, already scaled by 1/sqrt(D)

    def kv_step(s, carry, masked):
        m_prev, l_prev, acc_prev = carry
        start = pl.multiple_of(s * tk, tk)
        kt = k_ref[pl.ds(start, tk), :]                              # (tk, D)
        vt = v_ref[pl.ds(start, tk), :]                              # (tk, D)
        scores = jax.lax.dot_general(q, kt, (((1,), (1,)), ((), ())),
                                     preferred_element_type=jnp.float32)
        if masked:
            # Diagonal tile only: q_start == k_start (tq == tk), so the causal
            # condition reduces to local row >= local col.
            rows = jax.lax.broadcasted_iota(jnp.int32, (tq, tk), 0)
            cols = jax.lax.broadcasted_iota(jnp.int32, (tq, tk), 1)
            scores = jnp.where(rows >= cols, scores, -1e30)
        m_new = jnp.maximum(m_prev, jnp.max(scores, axis=-1, keepdims=True))
        alpha = jnp.exp(m_prev - m_new)
        p = jnp.exp(scores - m_new)
        l_new = alpha * l_prev + jnp.sum(p, axis=-1, keepdims=True)
        acc_new = alpha * acc_prev + jnp.dot(
            p.astype(vt.dtype), vt, preferred_element_type=jnp.float32)
        return m_new, l_new, acc_new

    carry0 = (jnp.full((tq, 1), -1e30, jnp.float32),   # running max
              jnp.zeros((tq, 1), jnp.float32),         # running denom
              jnp.zeros((tq, D), jnp.float32))         # running p @ v

    # Strictly-below-diagonal kv tiles: no mask work, dynamic trip count == i.
    carry = jax.lax.fori_loop(0, i, lambda s, c: kv_step(s, c, False), carry0)
    # Diagonal kv tile: the only one that needs the causal mask.
    _, l, acc = kv_step(i, carry, True)

    # Per-head normalized output and projection into the embedding dimension.
    y_h = acc * pl.reciprocal(l, approx=False)                       # (tq, D)
    contrib = jnp.dot(y_h.astype(wp_ref.dtype), wp_ref[h],
                      preferred_element_type=jnp.float32)            # (tq, C)

    # o_ref is revisited (same block index) across the innermost head axis:
    # init with the c_proj bias at h == 0, then accumulate each head.
    @pl.when(h == 0)
    def _init_out():
        o_ref[...] = jnp.broadcast_to(bp_ref[...], o_ref.shape).astype(o_ref.dtype)

    o_ref[...] = o_ref[...] + contrib.astype(o_ref.dtype)


def causal_self_attention(x, w_qkv, b_qkv, w_proj, b_proj, *, n_heads,
                          seq_tile=256):
    """x: (B, T, C) f32.  Weights pre-transposed to [in, out]:
       w_qkv (C, 3C), b_qkv (3C,), w_proj (C, C), b_proj (C,)."""
    B, T, C = x.shape
    H = n_heads
    assert C % H == 0, "C must be divisible by n_heads"
    D = C // H
    scale = 1.0 / math.sqrt(D)

    # Sequence tiling.  256 fills the 256-wide MXUs on v6e/v7x and amortizes
    # per-grid-step overhead; sweep (v5e may prefer 128).  tq == tk required
    # (diagonal-tile mask relies on it).
    tq = tk = tr = min(T, seq_tile)
    assert T % tq == 0, "T must be divisible by the sequence tile size"
    n_row, n_q = T // tr, T // tq

    # ---- one-time parameter layout rearrangement (outside the kernels) ----
    wq, wk, wv = w_qkv[:, :C], w_qkv[:, C:2 * C], w_qkv[:, 2 * C:]
    bq, bk, bv = b_qkv[:C], b_qkv[C:2 * C], b_qkv[2 * C:]

    def per_head(w):                       # (C, C)[in, out] -> (H, C, D)
        return jnp.transpose(w.reshape(C, H, D), (1, 0, 2))

    # Fused per-head [wq | wk | wv] -> (H, C, 3D); 1/sqrt(D) folded into Q.
    w_fused = jnp.concatenate(
        [per_head(wq * scale), per_head(wk), per_head(wv)], axis=-1
    ).astype(jnp.bfloat16)
    b_fused = jnp.concatenate(
        [(bq * scale).reshape(H, 1, D), bk.reshape(H, 1, D),
         bv.reshape(H, 1, D)], axis=-1).astype(jnp.float32)

    wp_h = w_proj.reshape(H, D, C).astype(jnp.bfloat16)  # per-head c_proj rows
    bp = b_proj.reshape(1, C).astype(jnp.float32)

    x_bf = x.astype(jnp.bfloat16)

    # Raised scoped-VMEM limit (headroom under v7x's 64 MiB physical VMEM).
    vmem_limit = 48 * 1024 * 1024

    # ---- stage 1: fused per-head QKV projection -> (B, H, T, D) bf16 ----
    qkv_shape = jax.ShapeDtypeStruct((B, H, T, D), jnp.bfloat16)
    q, k, v = pl.pallas_call(
        functools.partial(_qkv_proj_kernel, head_dim=D),
        out_shape=(qkv_shape, qkv_shape, qkv_shape),
        grid_spec=pltpu.PrefetchScalarGridSpec(
            num_scalar_prefetch=0,
            grid=(B, n_row, H),
            in_specs=[
                pl.BlockSpec((None, tr, C), lambda b, i, h: (b, i, 0)),
                pl.BlockSpec((None, C, 3 * D), lambda b, i, h: (h, 0, 0)),
                pl.BlockSpec((None, 1, 3 * D), lambda b, i, h: (h, 0, 0)),
            ],
            out_specs=[
                pl.BlockSpec((None, None, tr, D), lambda b, i, h: (b, h, i, 0)),
                pl.BlockSpec((None, None, tr, D), lambda b, i, h: (b, h, i, 0)),
                pl.BlockSpec((None, None, tr, D), lambda b, i, h: (b, h, i, 0)),
            ],
        ),
        compiler_params=pltpu.CompilerParams(
            dimension_semantics=("parallel", "parallel", "parallel"),
            vmem_limit_bytes=vmem_limit),
    )(x_bf, w_fused, b_fused)

    # ---- stage 2: flash attention + output projection -> (B, T, C) f32 ----
    kernel = functools.partial(_attn_proj_kernel, tq=tq, tk=tk)
    return pl.pallas_call(
        kernel,
        out_shape=jax.ShapeDtypeStruct((B, T, C), x.dtype),
        grid_spec=pltpu.PrefetchScalarGridSpec(
            num_scalar_prefetch=0,
            grid=(B, n_q, H),
            in_specs=[
                pl.BlockSpec((None, None, tq, D), lambda b, i, h: (b, h, i, 0)),
                pl.BlockSpec((None, None, T, D), lambda b, i, h: (b, h, 0, 0)),
                pl.BlockSpec((None, None, T, D), lambda b, i, h: (b, h, 0, 0)),
                # c_proj resident in VMEM: constant index map -> fetched once.
                pl.BlockSpec((H, D, C), lambda b, i, h: (0, 0, 0)),
                pl.BlockSpec((1, C), lambda b, i, h: (0, 0)),
            ],
            out_specs=pl.BlockSpec((None, tq, C), lambda b, i, h: (b, i, 0)),
        ),
        compiler_params=pltpu.CompilerParams(
            # head axis must stay sequential ("arbitrary"): the output block
            # is revisited/accumulated across it.
            dimension_semantics=("parallel", "parallel", "arbitrary"),
            vmem_limit_bytes=vmem_limit),
    )(q, k, v, wp_h, bp)


def _reference(x, w_qkv, b_qkv, w_proj, b_proj, n_heads):
    """Plain-JAX f32 reference matching the PyTorch forward."""
    B, T, C = x.shape
    D = C // n_heads
    qkv = jnp.einsum("btc,cd->btd", x, w_qkv) + b_qkv
    q, k, v = jnp.split(qkv, 3, axis=-1)
    q = q.reshape(B, T, n_heads, D).transpose(0, 2, 1, 3)
    k = k.reshape(B, T, n_heads, D).transpose(0, 2, 1, 3)
    v = v.reshape(B, T, n_heads, D).transpose(0, 2, 1, 3)
    att = jnp.einsum("bhtd,bhsd->bhts", q, k) / math.sqrt(D)
    mask = jnp.tril(jnp.ones((T, T), dtype=bool))
    att = jnp.where(mask[None, None], att, -jnp.inf)
    att = jax.nn.softmax(att, axis=-1)
    y = jnp.einsum("bhts,bhsd->bhtd", att, v)
    y = y.transpose(0, 2, 1, 3).reshape(B, T, C)
    return jnp.einsum("btc,cd->btd", y, w_proj) + b_proj


if __name__ == "__main__":
    # Small config implied by the module: n_embed=32, n_heads=4, block_size>=T
    B, T, C, H = 2, 8, 32, 4

    key = jax.random.PRNGKey(0)
    k1, k2, k3, k4, k5 = jax.random.split(key, 5)

    x = jax.random.normal(k1, (B, T, C), dtype=jnp.float32)

    # Deterministic parameter init, mimicking nn.Linear's U(-1/sqrt(fan_in), ...)
    bound = 1.0 / math.sqrt(C)
    w_qkv = jax.random.uniform(k2, (C, 3 * C), jnp.float32, -bound, bound)
    b_qkv = jax.random.uniform(k3, (3 * C,), jnp.float32, -bound, bound)
    w_proj = jax.random.uniform(k4, (C, C), jnp.float32, -bound, bound)
    b_proj = jax.random.uniform(k5, (C,), jnp.float32, -bound, bound)

    out = causal_self_attention(x, w_qkv, b_qkv, w_proj, b_proj, n_heads=H)
    out = jax.block_until_ready(out)

    ref = _reference(x, w_qkv, b_qkv, w_proj, b_proj, H)
    assert out.shape == (B, T, C)
    # bf16 MXU operands with f32 accumulation -> mixed-precision tolerance.
    assert jnp.allclose(out, ref, atol=5e-2, rtol=5e-2), "mismatch vs reference"

    print("KERNEL_OK")
</pallas_src>

<mosaic_0001>
module attributes {stable_mosaic.version = 11 : i64} {
  func.func @_qkv_proj_kernel(%arg0: i32, %arg1: i32, %arg2: i32, %arg3: memref<1x8x32xbf16, #tpu.memory_space<vmem>>, %arg4: memref<1x32x24xbf16, #tpu.memory_space<vmem>>, %arg5: memref<1x1x24xf32, #tpu.memory_space<vmem>>, %arg6: memref<1x1x8x8xbf16, #tpu.memory_space<vmem>>, %arg7: memref<1x1x8x8xbf16, #tpu.memory_space<vmem>>, %arg8: memref<1x1x8x8xbf16, #tpu.memory_space<vmem>>) attributes {dimension_semantics = [#tpu.dimension_semantics<parallel>, #tpu.dimension_semantics<parallel>, #tpu.dimension_semantics<parallel>], iteration_bounds = array<i64: 2, 1, 4>, scalar_prefetch = 0 : i64, scratch_operands = 0 : i64, tpu.core_type = #tpu.core_type<tc>, window_params = [{transform_indices = @transform_0, window_bounds = array<i64: 1, 8, 32>}, {transform_indices = @transform_1, window_bounds = array<i64: 1, 32, 24>}, {transform_indices = @transform_2, window_bounds = array<i64: 1, 1, 24>}, {transform_indices = @transform_3, window_bounds = array<i64: 1, 1, 8, 8>}, {transform_indices = @transform_4, window_bounds = array<i64: 1, 1, 8, 8>}, {transform_indices = @transform_5, window_bounds = array<i64: 1, 1, 8, 8>}]} {
    %c0 = arith.constant 0 : index
    %c0_0 = arith.constant 0 : index
    %c0_1 = arith.constant 0 : index
    %0 = vector.load %arg3[%c0, %c0_0, %c0_1] : memref<1x8x32xbf16, #tpu.memory_space<vmem>>, vector<1x8x32xbf16>
    %1 = vector.shape_cast %0 : vector<1x8x32xbf16> to vector<8x32xbf16>
    %c0_2 = arith.constant 0 : index
    %c0_3 = arith.constant 0 : index
    %c0_4 = arith.constant 0 : index
    %2 = vector.load %arg4[%c0_2, %c0_3, %c0_4] : memref<1x32x24xbf16, #tpu.memory_space<vmem>>, vector<1x32x24xbf16>
    %3 = vector.shape_cast %2 : vector<1x32x24xbf16> to vector<32x24xbf16>
    %cst = arith.constant dense<0.000000e+00> : vector<8x24xf32>
    %4 = tpu.matmul %1, %3, %cst {dimension_numbers = #tpu.dot_dimension_numbers<[1], [0], [0], [1], [0, 0, 1, 1], [], []>} : vector<8x32xbf16>, vector<32x24xbf16>, vector<8x24xf32> -> vector<8x24xf32>
    %c0_5 = arith.constant 0 : index
    %c0_6 = arith.constant 0 : index
    %c0_7 = arith.constant 0 : index
    %5 = vector.load %arg5[%c0_5, %c0_6, %c0_7] : memref<1x1x24xf32, #tpu.memory_space<vmem>>, vector<1x1x24xf32>
    %6 = vector.shape_cast %5 : vector<1x1x24xf32> to vector<1x24xf32>
    %7 = vector.broadcast %6 : vector<1x24xf32> to vector<8x24xf32>
    %8 = arith.addf %4, %7 : vector<8x24xf32>
    %9 = vector.extract_strided_slice %8 {offsets = [0, 0], sizes = [8, 8], strides = [1, 1]} : vector<8x24xf32> to vector<8x8xf32>
    %10 = arith.truncf %9 : vector<8x8xf32> to vector<8x8xbf16>
    %c0_8 = arith.constant 0 : index
    %c0_9 = arith.constant 0 : index
    %c0_10 = arith.constant 0 : index
    %c0_11 = arith.constant 0 : index
    %11 = vector.load %arg6[%c0_8, %c0_9, %c0_10, %c0_11] : memref<1x1x8x8xbf16, #tpu.memory_space<vmem>>, vector<1x1x8x8xbf16>
    %12 = vector.shape_cast %11 : vector<1x1x8x8xbf16> to vector<8x8xbf16>
    %13 = vector.shape_cast %10 : vector<8x8xbf16> to vector<1x1x8x8xbf16>
    tpu.vector_store %arg6[%c0_8, %c0_9, %c0_10, %c0_11], %13 {strides = array<i32>} : memref<1x1x8x8xbf16, #tpu.memory_space<vmem>>, vector<1x1x8x8xbf16>,
    %14 = vector.extract_strided_slice %8 {offsets = [0, 8], sizes = [8, 8], strides = [1, 1]} : vector<8x24xf32> to vector<8x8xf32>
    %15 = arith.truncf %14 : vector<8x8xf32> to vector<8x8xbf16>
    %c0_12 = arith.constant 0 : index
    %c0_13 = arith.constant 0 : index
    %c0_14 = arith.constant 0 : index
    %c0_15 = arith.constant 0 : index
    %16 = vector.load %arg7[%c0_12, %c0_13, %c0_14, %c0_15] : memref<1x1x8x8xbf16, #tpu.memory_space<vmem>>, vector<1x1x8x8xbf16>
    %17 = vector.shape_cast %16 : vector<1x1x8x8xbf16> to vector<8x8xbf16>
    %18 = vector.shape_cast %15 : vector<8x8xbf16> to vector<1x1x8x8xbf16>
    tpu.vector_store %arg7[%c0_12, %c0_13, %c0_14, %c0_15], %18 {strides = array<i32>} : memref<1x1x8x8xbf16, #tpu.memory_space<vmem>>, vector<1x1x8x8xbf16>,
    %19 = vector.extract_strided_slice %8 {offsets = [0, 16], sizes = [8, 8], strides = [1, 1]} : vector<8x24xf32> to vector<8x8xf32>
    %20 = arith.truncf %19 : vector<8x8xf32> to vector<8x8xbf16>
    %c0_16 = arith.constant 0 : index
    %c0_17 = arith.constant 0 : index
    %c0_18 = arith.constant 0 : index
    %c0_19 = arith.constant 0 : index
    %21 = vector.load %arg8[%c0_16, %c0_17, %c0_18, %c0_19] : memref<1x1x8x8xbf16, #tpu.memory_space<vmem>>, vector<1x1x8x8xbf16>
    %22 = vector.shape_cast %21 : vector<1x1x8x8xbf16> to vector<8x8xbf16>
    %23 = vector.shape_cast %20 : vector<8x8xbf16> to vector<1x1x8x8xbf16>
    tpu.vector_store %arg8[%c0_16, %c0_17, %c0_18, %c0_19], %23 {strides = array<i32>} : memref<1x1x8x8xbf16, #tpu.memory_space<vmem>>, vector<1x1x8x8xbf16>,
    return
  }
  func.func @transform_0(%arg0: i32, %arg1: i32, %arg2: i32) -> (i32, i32, i32) {
    %c0_i32 = arith.constant 0 : i32
    %c0_i32_0 = arith.constant 0 : i32
    return %arg0, %arg1, %c0_i32 : i32, i32, i32
  }
  func.func @transform_1(%arg0: i32, %arg1: i32, %arg2: i32) -> (i32, i32, i32) {
    %c0_i32 = arith.constant 0 : i32
    %c0_i32_0 = arith.constant 0 : i32
    %c0_i32_1 = arith.constant 0 : i32
    return %arg2, %c0_i32, %c0_i32_0 : i32, i32, i32
  }
  func.func @transform_2(%arg0: i32, %arg1: i32, %arg2: i32) -> (i32, i32, i32) {
    %c0_i32 = arith.constant 0 : i32
    %c0_i32_0 = arith.constant 0 : i32
    %c0_i32_1 = arith.constant 0 : i32
    return %arg2, %c0_i32, %c0_i32_0 : i32, i32, i32
  }
  func.func @transform_3(%arg0: i32, %arg1: i32, %arg2: i32) -> (i32, i32, i32, i32) {
    %c0_i32 = arith.constant 0 : i32
    %c0_i32_0 = arith.constant 0 : i32
    return %arg0, %arg2, %arg1, %c0_i32 : i32, i32, i32, i32
  }
  func.func @transform_4(%arg0: i32, %arg1: i32, %arg2: i32) -> (i32, i32, i32, i32) {
    %c0_i32 = arith.constant 0 : i32
    %c0_i32_0 = arith.constant 0 : i32
    return %arg0, %arg2, %arg1, %c0_i32 : i32, i32, i32, i32
  }
  func.func @transform_5(%arg0: i32, %arg1: i32, %arg2: i32) -> (i32, i32, i32, i32) {
    %c0_i32 = arith.constant 0 : i32
    %c0_i32_0 = arith.constant 0 : i32
    return %arg0, %arg2, %arg1, %c0_i32 : i32, i32, i32, i32
  }
}

</mosaic_0001>

<llo_original>
// kernel: tpu_custom_call.1
$region0: #{tpu_custom_call.1}
  #allocation0 [shape = 'u32[]', space=smem, size = 0x4, offset = 0x4, fixed_abs, tag = 'smem constant byte address 0x4 - core index']
  #allocation1 [shape = 'u32[72,128]{1,0:T(1,128)}', space=vmem, size = 0x9000, scoped, tag = 'internal scratch']
  %s0 = inlined_call_operand.vmem [shape: bf16[2,8,32], index: 0, kind: input, shape index: {}]
  %s1 = inlined_call_operand.vmem [shape: bf16[4,32,24], index: 1, kind: input, shape index: {}]
  %s2 = inlined_call_operand.vmem [shape: f32[4,1,24], index: 2, kind: input, shape index: {}]
  %s3 = inlined_call_operand.hbm [shape: bf16[2,4,8,8], index: 3, kind: output, shape index: {0}]
  %s4 = inlined_call_operand.hbm [shape: bf16[2,4,8,8], index: 4, kind: output, shape index: {1}]
  %s5 = inlined_call_operand.hbm [shape: bf16[2,4,8,8], index: 5, kind: output, shape index: {2}]
  %6 = xla_tuple %s3, %s4, %s5
  %s7 = sld [smem:[#allocation0]]
  $region61: #{tpu_custom_call.1} parent=0
    _
  %s9 = ssub.s32 1, %s7
  %s10 = scalar_select 0, %s9, %s7
  $region1: #{tpu_custom_call.1} parent=0
    #allocation2 [shape = 'u8[4096]{0}', space=vmem, size = 0x1000, scoped, tag = 'output window, operand 0']
    #allocation3 [shape = 's32[2]{0}', space=sflag, size = 0x8, scoped, tag = 'scoped memory for tpu_custom_call.1']
    #allocation4 [shape = 'u8[4096]{0}', space=vmem, size = 0x1000, scoped, tag = 'output window, operand 1']
    #allocation5 [shape = 's32[2]{0}', space=sflag, size = 0x8, scoped, tag = 'scoped memory for tpu_custom_call.1']
    #allocation6 [shape = 'u8[4096]{0}', space=vmem, size = 0x1000, scoped, tag = 'output window, operand 2']
    %11 = vsyncpa [#allocation3], 0
    %s12 = scalar_lea.sflag [#allocation3], 1
    %13 = vsyncpa %s12, 0
    %14 = vsyncpa [#allocation5], 0
    %s15 = scalar_lea.sflag [#allocation5], 1
    %16 = vsyncpa %s15, 0
    loop: start=0, step=1, limit=10
    $region2: #{tpu_custom_call.1} parent=1 // loop_pre_header
      _
    $region3: #{tpu_custom_call.1} parent=1 // loop_header
      %s18 = sphi 0, %s22
      %p19 = scmp.ge.s32.totalorder %s18, 10
      %s25 = sphi 0, %s44
      %s26 = sphi 0, %s40
      %s27 = sphi 0, %s36
      %s28 = sphi 0, %s25
      %s29 = sphi 0, %s26
      %s30 = sphi 0, %s27
      %s31 = sphi 0, %s28
      %s32 = sphi 0, %s29
      %s33 = sphi 0, %s30
      %s49 = sphi 0, %s51
      %s52 = sphi 0, %s49
      %s53 = sphi 0, %s52
      %s69 = sphi 0, %s53
      %s75 = sphi 0, %s77
      %s78 = sphi 0, %s75
      %s79 = sphi 0, %s78
      %s95 = sphi 0, %s79
      %s101 = sphi 0, %s103
      %s104 = sphi 0, %s101
      %s105 = sphi 0, %s104
      %s121 = sphi 0, %s105
      %s131 = sphi 0, %s133
      %s134 = sphi 0, %s131
      %s135 = sphi 0, %s134
      %s151 = sphi 0, %s135
      %s161 = sphi 0, %s163
      %s164 = sphi 0, %s161
      %s165 = sphi 0, %s164
      %s181 = sphi 0, %s165
      %s191 = sphi 0, %s193
      %s194 = sphi 0, %s191
      %s195 = sphi 0, %s194
      %s211 = sphi 0, %s195
    $region4: #{tpu_custom_call.1} parent=1 // loop_header_branch
      %21 = sbr.rel (%p19) target = $region8
    $region5: #{tpu_custom_call.1} parent=1 // loop_body
      %s23 = ssub.s32 %s18, 1
      %s24 = ssub.s32 %s18, 2
      %s34 = sadd.s32 1, %s27
      %p35 = scmp.ge.s32.totalorder %s34, 4
      %s36 = scalar_select %p35, 0, %s34
      %s37 = sadd.s32 1, %s26
      %s38 = scalar_select %p35, %s37, %s26
      %p39 = scmp.ge.s32.totalorder %s38, 1
      %s40 = scalar_select %p39, 0, %s38
      %s41 = sadd.s32 1, %s25
      %s42 = scalar_select %p39, %s41, %s25
      %p43 = scmp.ge.s32.totalorder %s42, 2
      %s44 = scalar_select %p43, 0, %s42
      %s45 = ssub.s32 %s25, %s44
      %s46 = ssub.s32 %s26, %s40
      %s47 = sor.u32 %s45, %s46
      %p48 = scmp.eq.s32.totalorder %s47, 0
      %s50 = sadd.s32 %s49, 1
      %s51 = scalar_select %p48, %s49, %s50
      %p54 = pneg %p48
      %p55 = scmp.eq.s32.totalorder %s18, 7
      %p56 = por %p54, %p55
      %p57 = scmp.ne.s32.totalorder %s49, %s52
      %p58 = scmp.eq.s32.totalorder %s18, 0
      %p59 = por %p57, %p58
      %p60 = scmp.ne.s32.totalorder %s49, %s52
      %p61 = scmp.eq.s32.totalorder %s23, 7
      %p62 = por %p60, %p61
      %p63 = scmp.ne.s32.totalorder %s52, %s53
      %p64 = scmp.eq.s32.totalorder %s23, 0
      %p65 = por %p63, %p64
      %p66 = scmp.ne.s32.totalorder %s52, %s53
      %p67 = scmp.eq.s32.totalorder %s24, 7
      %p68 = por %p66, %p67
      %p70 = scmp.ne.s32.totalorder %s53, %s69
      %p71 = scmp.eq.s32.totalorder %s24, 0
      %p72 = por %p70, %p71
      %s73 = ssub.s32 %s27, %s36
      %p74 = scmp.eq.s32.totalorder %s73, 0
      %s76 = sadd.s32 %s75, 1
      %s77 = scalar_select %p74, %s75, %s76
      %p80 = pneg %p74
      %p81 = scmp.eq.s32.totalorder %s18, 7
      %p82 = por %p80, %p81
      %p83 = scmp.ne.s32.totalorder %s75, %s78
      %p84 = scmp.eq.s32.totalorder %s18, 0
      %p85 = por %p83, %p84
      %p86 = scmp.ne.s32.totalorder %s75, %s78
      %p87 = scmp.eq.s32.totalorder %s23, 7
      %p88 = por %p86, %p87
      %p89 = scmp.ne.s32.totalorder %s78, %s79
      %p90 = scmp.eq.s32.totalorder %s23, 0
      %p91 = por %p89, %p90
      %p92 = scmp.ne.s32.totalorder %s78, %s79
      %p93 = scmp.eq.s32.totalorder %s24, 7
      %p94 = por %p92, %p93
      %p96 = scmp.ne.s32.totalorder %s79, %s95
      %p97 = scmp.eq.s32.totalorder %s24, 0
      %p98 = por %p96, %p97
      %s99 = ssub.s32 %s27, %s36
      %p100 = scmp.eq.s32.totalorder %s99, 0
      %s102 = sadd.s32 %s101, 1
      %s103 = scalar_select %p100, %s101, %s102
      %p106 = pneg %p100
      %p107 = scmp.eq.s32.totalorder %s18, 7
      %p108 = por %p106, %p107
      %p109 = scmp.ne.s32.totalorder %s101, %s104
      %p110 = scmp.eq.s32.totalorder %s18, 0
      %p111 = por %p109, %p110
      %p112 = scmp.ne.s32.totalorder %s101, %s104
      %p113 = scmp.eq.s32.totalorder %s23, 7
      %p114 = por %p112, %p113
      %p115 = scmp.ne.s32.totalorder %s104, %s105
      %p116 = scmp.eq.s32.totalorder %s23, 0
      %p117 = por %p115, %p116
      %p118 = scmp.ne.s32.totalorder %s104, %s105
      %p119 = scmp.eq.s32.totalorder %s24, 7
      %p120 = por %p118, %p119
      %p122 = scmp.ne.s32.totalorder %s105, %s121
      %p123 = scmp.eq.s32.totalorder %s24, 0
      %p124 = por %p122, %p123
      %s125 = ssub.s32 %s25, %s44
      %s126 = ssub.s32 %s27, %s36
      %s127 = sor.u32 %s125, %s126
      %s128 = ssub.s32 %s26, %s40
      %s129 = sor.u32 %s127, %s128
      %p130 = scmp.eq.s32.totalorder %s129, 0
      %s132 = sadd.s32 %s131, 1
      %s133 = scalar_select %p130, %s131, %s132
      %p136 = pneg %p130
      %p137 = scmp.eq.s32.totalorder %s18, 7
      %p138 = por %p136, %p137
      %p139 = scmp.ne.s32.totalorder %s131, %s134
      %p140 = scmp.eq.s32.totalorder %s18, 0
      %p141 = por %p139, %p140
      %p142 = scmp.ne.s32.totalorder %s131, %s134
      %p143 = scmp.eq.s32.totalorder %s23, 7
      %p144 = por %p142, %p143
      %p145 = scmp.ne.s32.totalorder %s134, %s135
      %p146 = scmp.eq.s32.totalorder %s23, 0
      %p147 = por %p145, %p146
      %p148 = scmp.ne.s32.totalorder %s134, %s135
      %p149 = scmp.eq.s32.totalorder %s24, 7
      %p150 = por %p148, %p149
      %p152 = scmp.ne.s32.totalorder %s135, %s151
      %p153 = scmp.eq.s32.totalorder %s24, 0
      %p154 = por %p152, %p153
      %s155 = ssub.s32 %s25, %s44
      %s156 = ssub.s32 %s27, %s36
      %s157 = sor.u32 %s155, %s156
      %s158 = ssub.s32 %s26, %s40
      %s159 = sor.u32 %s157, %s158
      %p160 = scmp.eq.s32.totalorder %s159, 0
      %s162 = sadd.s32 %s161, 1
      %s163 = scalar_select %p160, %s161, %s162
      %p166 = pneg %p160
      %p167 = scmp.eq.s32.totalorder %s18, 7
      %p168 = por %p166, %p167
      %p169 = scmp.ne.s32.totalorder %s161, %s164
      %p170 = scmp.eq.s32.totalorder %s18, 0
      %p171 = por %p169, %p170
      %p172 = scmp.ne.s32.totalorder %s161, %s164
      %p173 = scmp.eq.s32.totalorder %s23, 7
      %p174 = por %p172, %p173
      %p175 = scmp.ne.s32.totalorder %s164, %s165
      %p176 = scmp.eq.s32.totalorder %s23, 0
      %p177 = por %p175, %p176
      %p178 = scmp.ne.s32.totalorder %s164, %s165
      %p179 = scmp.eq.s32.totalorder %s24, 7
      %p180 = por %p178, %p179
      %p182 = scmp.ne.s32.totalorder %s165, %s181
      %p183 = scmp.eq.s32.totalorder %s24, 0
      %p184 = por %p182, %p183
      %s185 = ssub.s32 %s25, %s44
      %s186 = ssub.s32 %s27, %s36
      %s187 = sor.u32 %s185, %s186
      %s188 = ssub.s32 %s26, %s40
      %s189 = sor.u32 %s187, %s188
      %p190 = scmp.eq.s32.totalorder %s189, 0
      %s192 = sadd.s32 %s191, 1
      %s193 = scalar_select %p190, %s191, %s192
      %p196 = pneg %p190
      %p197 = scmp.eq.s32.totalorder %s18, 7
      %p198 = por %p196, %p197
      %p199 = scmp.ne.s32.totalorder %s191, %s194
      %p200 = scmp.eq.s32.totalorder %s18, 0
      %p201 = por %p199, %p200
      %p202 = scmp.ne.s32.totalorder %s191, %s194
      %p203 = scmp.eq.s32.totalorder %s23, 7
      %p204 = por %p202, %p203
      %p205 = scmp.ne.s32.totalorder %s194, %s195
      %p206 = scmp.eq.s32.totalorder %s23, 0
      %p207 = por %p205, %p206
      %p208 = scmp.ne.s32.totalorder %s194, %s195
      %p209 = scmp.eq.s32.totalorder %s24, 7
      %p210 = por %p208, %p209
      %p212 = scmp.ne.s32.totalorder %s195, %s211
      %p213 = scmp.eq.s32.totalorder %s24, 0
      %p214 = por %p212, %p213
      %p215 = scmp.le.s32.totalorder 1, %s18
      %p216 = scmp.lt.s32.totalorder %s18, 9
      %p217 = pnand %p215, %p216
      %p218 = pneg %p217
      // Predicated region
      $region9: #{tpu_custom_call.1} parent=5 // pred_check
        _
      $region10: #{tpu_custom_call.1} parent=5 // pred_check_branch
        %220 = sbr.rel (%p217) target = $region12
      $region11: #{tpu_custom_call.1} parent=5 // pred_region
        %s221 = ssub.s32 %s18, 1
      $region12: #{tpu_custom_call.1} parent=5 // pred_fallthru
        _
      %p222 = scmp.lt.s32.totalorder %s18, 8
      // Predicated region
      $region13: #{tpu_custom_call.1} parent=5 // pred_check
        %p223 = pneg %p222
      $region14: #{tpu_custom_call.1} parent=5 // pred_check_branch
        %225 = sbr.rel (%p223) target = $region16
      $region15: #{tpu_custom_call.1} parent=5 // pred_region
        // Predicated region
        $region17: #{tpu_custom_call.1} parent=15 // pred_check
          %p226 = pneg %p59
        $region18: #{tpu_custom_call.1} parent=15 // pred_check_branch
          %228 = sbr.rel (%p226) target = $region20
        $region19: #{tpu_custom_call.1} parent=15 // pred_region
          %p229 = scmp.lt.s32.totalorder %s25, 1
          %s230 = scalar_select %p229, %s25, 1
          %p231 = scmp.lt.s32.totalorder %s26, 0
          %s232 = scalar_select %p231, %s26, 0
          %s233 = sadd.s32 %s232, %s230
          %s234 = smul.addr %s233, 4
          %s235 = scalar_lea.vmem %s0, %s234
        $region20: #{tpu_custom_call.1} parent=15 // pred_fallthru
          _
        // Predicated region
        $region21: #{tpu_custom_call.1} parent=15 // pred_check
          %p236 = pneg %p85
        $region22: #{tpu_custom_call.1} parent=15 // pred_check_branch
          %238 = sbr.rel (%p236) target = $region24
        $region23: #{tpu_custom_call.1} parent=15 // pred_region
          %p239 = scmp.lt.s32.totalorder %s27, 3
          %s240 = scalar_select %p239, %s27, 3
          %s241 = smul.addr %s240, 4
          %s242 = smul.addr %s241, 4
          %s243 = scalar_lea.vmem %s1, %s242
        $region24: #{tpu_custom_call.1} parent=15 // pred_fallthru
          _
        // Predicated region
        $region25: #{tpu_custom_call.1} parent=15 // pred_check
          %p244 = pneg %p111
        $region26: #{tpu_custom_call.1} parent=15 // pred_check_branch
          %246 = sbr.rel (%p244) target = $region28
        $region27: #{tpu_custom_call.1} parent=15 // pred_region
          %p247 = scmp.lt.s32.totalorder %s27, 3
          %s248 = scalar_select %p247, %s27, 3
          %s249 = scalar_lea.vmem %s2, %s248
        $region28: #{tpu_custom_call.1} parent=15 // pred_fallthru
          _
      $region16: #{tpu_custom_call.1} parent=5 // pred_fallthru
        _
      %p250 = scmp.le.s32.totalorder 1, %s18
      %p251 = scmp.lt.s32.totalorder %s18, 9
      %p252 = pnand %p250, %p251
      %p253 = pneg %p252
      // Predicated region
      $region29: #{tpu_custom_call.1} parent=5 // pred_check
        _
      $region30: #{tpu_custom_call.1} parent=5 // pred_check_branch
        %255 = sbr.rel (%p252) target = $region32
      $region31: #{tpu_custom_call.1} parent=5 // pred_region
        %s256 = ssub.s32 %s18, 1
        %p257 = scmp.lt.s32.totalorder %s28, 1
        %s258 = scalar_select %p257, %s28, 1
        %p259 = scmp.lt.s32.totalorder %s29, 0
        %s260 = scalar_select %p259, %s29, 0
        %s261 = sadd.s32 %s260, %s258
        %s262 = smul.addr %s261, 4
        %s263 = scalar_lea.vmem %s0, %s262
        %p264 = pneg %p65
        %p265 = pneg %p62
        %p266 = scmp.lt.s32.totalorder %s30, 3
        %s267 = scalar_select %p266, %s30, 3
        %s268 = smul.addr %s267, 4
        %s269 = smul.addr %s268, 4
        %s270 = scalar_lea.vmem %s1, %s269
        %p271 = pneg %p91
        %p272 = pneg %p88
        %p273 = scmp.lt.s32.totalorder %s30, 3
        %s274 = scalar_select %p273, %s30, 3
        %s275 = scalar_lea.vmem %s2, %s274
        %p276 = pneg %p117
        %p277 = pneg %p114
        %p278 = pneg %p147
        %p279 = pneg %p144
        %s280 = sand.u32 %s134, 1
        %s281 = scalar_lea.sflag [#allocation3], %s280
        %s282 = sand.u32 %s134, 1
        %s283 = smul.addr %s282, 4
        %s284 = scalar_lea.vmem [#allocation2], %s283
        %p285 = pneg %p177
        %p286 = pneg %p174
        %s287 = sand.u32 %s23, 1
        %s288 = scalar_lea.sflag [#allocation5], %s287
        %s289 = sand.u32 %s164, 1
        %s290 = smul.addr %s289, 4
        %s291 = scalar_lea.vmem [#allocation4], %s290
        %p292 = pneg %p207
        %p293 = pneg %p204
        %s294 = sand.u32 %s23, 1
        %s295 = scalar_lea.sflag [#allocation5], %s294
        %s296 = sand.u32 %s194, 1
        %s297 = smul.addr %s296, 4
        %s298 = scalar_lea.vmem [#allocation6], %s297
        %p299 = scmp.lt.s32.totalorder %s28, 1
        %s300 = scalar_select %p299, %s28, 1
        %p301 = scmp.lt.s32.totalorder %s29, 0
        %s302 = scalar_select %p301, %s29, 0
        %s303 = sadd.s32 %s302, %s300
        %s304 = smul.addr %s303, 4
        %s305 = scalar_lea.vmem %s0, %s304
        %p306 = scmp.lt.s32.totalorder %s30, 3
        %s307 = scalar_select %p306, %s30, 3
        %s308 = smul.addr %s307, 4
        %s309 = smul.addr %s308, 4
        %s310 = scalar_lea.vmem %s1, %s309
        %p311 = scmp.lt.s32.totalorder %s30, 3
        %s312 = scalar_select %p311, %s30, 3
        %s313 = scalar_lea.vmem %s2, %s312
        %v315 = vld [vmem:[%s305] sm:$0xf]
        %v316 = vld [vmem:[%s310] sm:$0xf]
        %v317 = vld [vmem:[%s310 + $0x4] sm:$0xf]
        %v318 = vld [vmem:[%s310 + $0x8] sm:$0xf]
        %v319 = vld [vmem:[%s310 + $0xc] sm:$0xf]
        %v320 = vld [vmem:[%s313] sm:$0x1]
        %v322 = vperm.slane %v320, 0
        %v328 = vunpack.c.l.b16 %v316
        %v329 = vunpack.c.l.b16 %v317
        %v330 = vunpack.c.l.b16 %v318
        %v331 = vunpack.c.l.b16 %v319
        %v332 = vpack.c.b16 %v329, %v328
        %v333 = vpack.c.b16 %v331, %v330
        %vm336 = vcmask 261120
        %v338 = vsel %vm336, %v315, 0
        %340 = vmatpush.bf16.msra.mxu0 0
        %341 = vmatpush.bf16.msra.mxu0 0
        %342 = vmatpush.bf16.msra.mxu0 0
        %343 = vmatpush.bf16.msra.mxu0 0
        %344 = vmatpush.bf16.msra.mxu0 0
        %345 = vmatpush.bf16.msra.mxu0 0
        %346 = vmatpush.bf16.msra.mxu0 %v333
        %347 = vmatpush.bf16.msra.mxu0 %v332
        %348 = vmatmul.bf16.gmra.mxu0 %v338
        %v349 = vpop.f32.mrf.mxu0
        %v350 = vadd.f32 %v322, %v349
        %v351 = vpop.f32.mrf.mxu0
        %352 = vdwg.mxu0
        %v353 = vpack.c.bf16 %v350, %v350
        %vm354 = vcmask 60416
        %355 = vst.msk [vmem:[%s284] sm:$0xf] %vm354, %v353
        %357 = vrot.lane.b32.xlu0 %v353, 120
        %v358 = vpop.permute.xlu0 %357
        %360 = vst.msk [vmem:[%s291] sm:$0xf] %vm354, %v358
        %361 = vrot.lane.b32.xlu0 %v353, 112
        %v362 = vpop.permute.xlu0 %361
        %364 = vst.msk [vmem:[%s298] sm:$0xf] %vm354, %v362
        %s365 = sand.u32 %s134, 1
        %s366 = scalar_lea.sflag [#allocation3], %s365
        %s367 = sand.u32 %s134, 1
        %s368 = smul.addr %s367, 4
        %s369 = scalar_lea.vmem [#allocation2], %s368
        %s370 = sand.u32 %s23, 1
        %s371 = scalar_lea.sflag [#allocation5], %s370
        %s372 = sand.u32 %s164, 1
        %s373 = smul.addr %s372, 4
        %s374 = scalar_lea.vmem [#allocation4], %s373
        %s375 = sand.u32 %s23, 1
        %s376 = scalar_lea.sflag [#allocation5], %s375
        %s377 = sand.u32 %s194, 1
        %s378 = smul.addr %s377, 4
        %s379 = scalar_lea.vmem [#allocation6], %s378
        // Predicated region
        $region33: #{tpu_custom_call.1} parent=31 // pred_check
          %p380 = pneg %p144
        $region34: #{tpu_custom_call.1} parent=31 // pred_check_branch
          %382 = sbr.rel (%p380) target = $region36
        $region35: #{tpu_custom_call.1} parent=31 // pred_region
          %384 = vsyncadd %s366, 0
          %s385 = sadd.s32 %s29, %s30
          %s386 = smul.addr %s28, 4
          %s387 = sadd.s32 %s385, %s386
          %s388 = smul.addr %s387, 4
          %s389 = scalar_lea.hbm %s3, %s388
          %s391 = sshll.u32 %s369, 4
          %s392 = int_to_ptr.vmem [resolvable:$true] %s391
          %s393 = sshll.u32 %s389, 4
          %s394 = int_to_ptr.hbm [resolvable:$true] %s393
          %396 = dma.vmem_to_hbm [thread:$0]  %s392, 64, %s394, %s366
        $region36: #{tpu_custom_call.1} parent=31 // pred_fallthru
          _
        // Predicated region
        $region37: #{tpu_custom_call.1} parent=31 // pred_check
          %p397 = pneg %p174
        $region38: #{tpu_custom_call.1} parent=31 // pred_check_branch
          %399 = sbr.rel (%p397) target = $region40
        $region39: #{tpu_custom_call.1} parent=31 // pred_region
          %401 = vsyncadd %s371, 0
          %s402 = sadd.s32 %s29, %s30
          %s403 = smul.addr %s28, 4
          %s404 = sadd.s32 %s402, %s403
          %s405 = smul.addr %s404, 4
          %s406 = scalar_lea.hbm %s4, %s405
          %s408 = sshll.u32 %s374, 4
          %s409 = int_to_ptr.vmem [resolvable:$true] %s408
          %s410 = sshll.u32 %s406, 4
          %s411 = int_to_ptr.hbm [resolvable:$true] %s410
          %413 = dma.vmem_to_hbm [thread:$0]  %s409, 64, %s411, %s371
        $region40: #{tpu_custom_call.1} parent=31 // pred_fallthru
          _
        // Predicated region
        $region41: #{tpu_custom_call.1} parent=31 // pred_check
          %p414 = pneg %p204
        $region42: #{tpu_custom_call.1} parent=31 // pred_check_branch
          %416 = sbr.rel (%p414) target = $region44
        $region43: #{tpu_custom_call.1} parent=31 // pred_region
          %418 = vsyncadd %s376, 0
          %s419 = sadd.s32 %s29, %s30
          %s420 = smul.addr %s28, 4
          %s421 = sadd.s32 %s419, %s420
          %s422 = smul.addr %s421, 4
          %s423 = scalar_lea.hbm %s5, %s422
          %s425 = sshll.u32 %s379, 4
          %s426 = int_to_ptr.vmem [resolvable:$true] %s425
          %s427 = sshll.u32 %s423, 4
          %s428 = int_to_ptr.hbm [resolvable:$true] %s427
          %430 = dma.vmem_to_hbm [thread:$0]  %s426, 64, %s428, %s376
        $region44: #{tpu_custom_call.1} parent=31 // pred_fallthru
          _
      $region32: #{tpu_custom_call.1} parent=5 // pred_fallthru
        _
      %p431 = scmp.le.s32.totalorder 2, %s18
      // Predicated region
      $region45: #{tpu_custom_call.1} parent=5 // pred_check
        %p432 = pneg %p431
      $region46: #{tpu_custom_call.1} parent=5 // pred_check_branch
        %434 = sbr.rel (%p432) target = $region48
      $region47: #{tpu_custom_call.1} parent=5 // pred_region
        %s435 = ssub.s32 %s18, 2
        // Predicated region
        $region49: #{tpu_custom_call.1} parent=47 // pred_check
          %p436 = pneg %p150
        $region50: #{tpu_custom_call.1} parent=47 // pred_check_branch
          %438 = sbr.rel (%p436) target = $region52
        $region51: #{tpu_custom_call.1} parent=47 // pred_region
          %s439 = sand.u32 %s135, 1
          %s440 = scalar_lea.sflag [#allocation3], %s439
          %s441 = sand.u32 %s135, 1
          %s442 = smul.addr %s441, 4
          %s443 = scalar_lea.vmem [#allocation2], %s442
          %445 = dma.done %s440, 64
        $region52: #{tpu_custom_call.1} parent=47 // pred_fallthru
          _
        // Predicated region
        $region53: #{tpu_custom_call.1} parent=47 // pred_check
          %p446 = pneg %p180
        $region54: #{tpu_custom_call.1} parent=47 // pred_check_branch
          %448 = sbr.rel (%p446) target = $region56
        $region55: #{tpu_custom_call.1} parent=47 // pred_region
          %s449 = sand.u32 %s24, 1
          %s450 = scalar_lea.sflag [#allocation5], %s449
          %s451 = sand.u32 %s165, 1
          %s452 = smul.addr %s451, 4
          %s453 = scalar_lea.vmem [#allocation4], %s452
          %455 = dma.done %s450, 64
        $region56: #{tpu_custom_call.1} parent=47 // pred_fallthru
          _
        // Predicated region
        $region57: #{tpu_custom_call.1} parent=47 // pred_check
          %p456 = pneg %p210
        $region58: #{tpu_custom_call.1} parent=47 // pred_check_branch
          %458 = sbr.rel (%p456) target = $region60
        $region59: #{tpu_custom_call.1} parent=47 // pred_region
          %s459 = sand.u32 %s24, 1
          %s460 = scalar_lea.sflag [#allocation5], %s459
          %s461 = sand.u32 %s195, 1
          %s462 = smul.addr %s461, 4
          %s463 = scalar_lea.vmem [#allocation6], %s462
          %465 = dma.done %s460, 64
        $region60: #{tpu_custom_call.1} parent=47 // pred_fallthru
          _
      $region48: #{tpu_custom_call.1} parent=5 // pred_fallthru
        _
    $region6: #{tpu_custom_call.1} parent=1 // loop_footer
      %s22 = sadd.s32 1, %s18
    $region7: #{tpu_custom_call.1} parent=1 // loop_footer_branch
      %17 = sbr.rel target = $region3
    $region8: #{tpu_custom_call.1} parent=1 // loop_exit
      _
    %466 = vsyncpa [#allocation3], 1
    %s467 = scalar_lea.sflag [#allocation3], 1
    %468 = vsyncpa %s467, 1
    %469 = vsyncpa [#allocation5], 1
    %s470 = scalar_lea.sflag [#allocation5], 1
    %471 = vsyncpa %s470, 1

</llo_original>
